<compile_context>
chip_gen: v7x
topology: tpu7x:2x2x1
jax: 0.10.0
libtpu: 0.0.40
codegen_flags: <defaults>
</compile_context>

<pallas_src>
import functools

import jax
import jax.numpy as jnp
from jax.experimental import pallas as pl
from jax.experimental.pallas import tpu as pltpu


def _device_kind() -> str:
    try:
        return jax.devices()[0].device_kind.lower()
    except Exception:
        return ""


def _tpu_vmem_bytes() -> int:
    # v7x has 64 MiB VMEM per TensorCore; v5e/v6e have 128 MiB.
    return (64 << 20) if "v7" in _device_kind() else (128 << 20)


def _compute_dtype(in_dtype):
    """bf16 stays bf16 on chips with a bf16 VPU (v6e/v7x); everything else f32."""
    if in_dtype == jnp.float32:
        return jnp.float32
    if in_dtype == jnp.bfloat16:
        kind = _device_kind()
        if ("v6" in kind) or ("v7" in kind):
            return jnp.bfloat16
        return jnp.float32
    # TODO(synk): integer inputs are upcast to f32 (lossy above 2^24); a
    # faithful integer kMaxPool would need an integer sentinel instead of -inf.
    return jnp.float32


def _pick_row_tile(rows: int, L: int, in_itemsize: int, comp_itemsize: int) -> int:
    """Largest row tile (multiple of 8, <= 1024) whose live VMEM footprint fits."""
    budget = int(_tpu_vmem_bytes() * 0.6)
    # Per-row live bytes ~= 2x double-buffered input DMA + work copy of x +
    # int32 lane iota + a couple of compare/select temporaries.
    per_row = L * (2 * in_itemsize + 3 * comp_itemsize + 4)
    rt = budget // max(per_row, 1)
    rt = max(8, min(1024, (rt // 8) * 8))
    rows_pad8 = ((rows + 7) // 8) * 8
    rt = min(rt, rows_pad8)
    # v7x has 2 TensorCores sharding the single "parallel" grid axis: prefer
    # >= 2 grid steps whenever there are enough rows to split.
    if rt >= rows and rows >= 16:
        rt = max(8, ((((rows + 1) // 2) + 7) // 8) * 8)
    return rt


def _kmax_kernel(x_ref, o_ref, *, k: int, compute_dtype):
    """For each row of the (TR, L) tile, write its k largest values (sorted
    descending, duplicates kept) into the (TR, k) output tile."""
    x = x_ref[...]
    if x.dtype != compute_dtype:
        x = x.astype(compute_dtype)
    L = x.shape[-1]
    # Negated lane index so the first-occurrence reduction is also a *max*
    # (shares the XLU max path with the value reduction).
    neg_idx = -jax.lax.broadcasted_iota(jnp.int32, x.shape, dimension=1)
    neg_inf = jnp.array(-jnp.inf, compute_dtype)

    # k is a small static int -> static Python loop (unrolled at trace time).
    for i in range(k):
        m = jnp.max(x, axis=-1, keepdims=True)                     # (TR, 1)
        o_ref[:, i:i + 1] = m.astype(o_ref.dtype)                  # direct column store
        if i + 1 < k:
            # Mask out exactly ONE occurrence of the max (the first one), so
            # duplicated maxima are still returned multiple times, like topk.
            is_max = x == m
            neg_first = jnp.max(jnp.where(is_max, neg_idx, jnp.int32(-L)),
                                axis=-1, keepdims=True)            # (TR, 1)
            x = jnp.where(neg_idx == neg_first, neg_inf, x)


def k_max_pool(x: jax.Array, k: int, *, row_tile=None) -> jax.Array:
    """Pallas implementation of kMaxPool.forward.

    x: [B, C, H, W]  ->  output [B, C * k]
    """
    B, C, H, W = x.shape
    L = H * W
    assert 1 <= k <= L, f"k={k} must be in [1, H*W={L}]"
    rows = B * C
    x2 = x.reshape(rows, L)

    comp_dtype = _compute_dtype(x.dtype)
    in_itemsize = jnp.dtype(x.dtype).itemsize
    comp_itemsize = jnp.dtype(comp_dtype).itemsize

    if row_tile is None:
        row_tile = _pick_row_tile(rows, L, in_itemsize, comp_itemsize)
    else:
        row_tile = max(8, ((row_tile + 7) // 8) * 8)

    grid = (pl.cdiv(rows, row_tile),)

    # Scoped VMEM sized to the chosen block (plus headroom), capped below the
    # physical per-core VMEM (64 MiB on v7x, 128 MiB on v5e/v6e).
    needed = row_tile * L * (2 * in_itemsize + 3 * comp_itemsize + 4) + (8 << 20)
    vmem_limit = int(min(_tpu_vmem_bytes() - (16 << 20), max(32 << 20, needed)))

    out = pl.pallas_call(
        functools.partial(_kmax_kernel, k=k, compute_dtype=comp_dtype),
        out_shape=jax.ShapeDtypeStruct((rows, k), x.dtype),
        grid_spec=pltpu.PrefetchScalarGridSpec(
            num_scalar_prefetch=0,
            grid=grid,
            in_specs=[pl.BlockSpec((row_tile, L), lambda i: (i, 0))],
            out_specs=pl.BlockSpec((row_tile, k), lambda i: (i, 0)),
        ),
        compiler_params=pltpu.CompilerParams(
            dimension_semantics=("parallel",),
            vmem_limit_bytes=vmem_limit),
    )(x2)

    return out.reshape(B, C * k)


def k_max_pool_ref(x: jax.Array, k: int) -> jax.Array:
    """Pure-JAX reference mirroring torch topk semantics."""
    B, C, H, W = x.shape
    flat = x.reshape(B, C, H * W)
    vals, _ = jax.lax.top_k(flat, k)     # sorted descending, like torch.topk
    return vals.reshape(B, C * k)


if __name__ == "__main__":
    key = jax.random.PRNGKey(0)
    B, C, H, W = 2, 4, 16, 16
    k = 5

    x = jax.random.normal(key, (B, C, H, W), dtype=jnp.float32)

    out = jax.block_until_ready(k_max_pool(x, k))
    ref = k_max_pool_ref(x, k)
    assert out.shape == (B, C * k), out.shape
    assert jnp.allclose(out, ref, atol=1e-6, rtol=1e-6), (out, ref)

    # Ragged row count (B*C not a multiple of the row tile) exercises the
    # no-pad path where Pallas masks the partial last block.
    B2, C2 = 3, 5
    x_r = jax.random.normal(jax.random.PRNGKey(1), (B2, C2, H, W), dtype=jnp.float32)
    out_r = jax.block_until_ready(k_max_pool(x_r, k, row_tile=8))
    ref_r = k_max_pool_ref(x_r, k)
    assert out_r.shape == (B2, C2 * k), out_r.shape
    assert jnp.allclose(out_r, ref_r, atol=1e-6, rtol=1e-6), (out_r, ref_r)

    print("KERNEL_OK")
</pallas_src>

<mosaic_0001>
module attributes {stable_mosaic.version = 11 : i64} {
  func.func @_kmax_kernel(%arg0: i32, %arg1: memref<8x256xf32, #tpu.memory_space<vmem>>, %arg2: memref<8x5xf32, #tpu.memory_space<vmem>>) attributes {dimension_semantics = [#tpu.dimension_semantics<parallel>], iteration_bounds = array<i64: 1>, scalar_prefetch = 0 : i64, scratch_operands = 0 : i64, tpu.core_type = #tpu.core_type<tc>, window_params = [{transform_indices = @transform_0, window_bounds = array<i64: 8, 256>}, {transform_indices = @transform_1, window_bounds = array<i64: 8, 5>}]} {
    %c0 = arith.constant 0 : index
    %c0_0 = arith.constant 0 : index
    %0 = vector.load %arg1[%c0, %c0_0] : memref<8x256xf32, #tpu.memory_space<vmem>>, vector<8x256xf32>
    %1 = tpu.iota {dimensions = array<i32: 1>} : vector<8x256xi32>
    %c0_i32 = arith.constant 0 : i32
    %2 = vector.broadcast %c0_i32 : i32 to vector<8x256xi32>
    %3 = arith.subi %2, %1 : vector<8x256xi32>
    %cst = arith.constant dense<0xFF800000> : vector<8xf32>
    %4 = vector.multi_reduction <maximumf>, %0, %cst [1] : vector<8x256xf32> to vector<8xf32>
    %5 = vector.shape_cast %4 : vector<8xf32> to vector<8x1xf32>
    %c0_1 = arith.constant 0 : index
    %c0_2 = arith.constant 0 : index
    %6 = vector.load %arg2[%c0_1, %c0_2] : memref<8x5xf32, #tpu.memory_space<vmem>>, vector<8x1xf32>
    tpu.vector_store %arg2[%c0_1, %c0_2], %5 {strides = array<i32>} : memref<8x5xf32, #tpu.memory_space<vmem>>, vector<8x1xf32>,
    %7 = vector.broadcast %5 : vector<8x1xf32> to vector<8x256xf32>
    %8 = arith.cmpf oeq, %0, %7 : vector<8x256xf32>
    %c-256_i32 = arith.constant -256 : i32
    %9 = vector.broadcast %c-256_i32 : i32 to vector<8x256xi32>
    %10 = arith.select %8, %3, %9 : vector<8x256xi1>, vector<8x256xi32>
    %cst_3 = arith.constant dense<-2147483648> : vector<8xi32>
    %11 = vector.multi_reduction <maxsi>, %10, %cst_3 [1] : vector<8x256xi32> to vector<8xi32>
    %12 = vector.shape_cast %11 : vector<8xi32> to vector<8x1xi32>
    %13 = vector.broadcast %12 : vector<8x1xi32> to vector<8x256xi32>
    %14 = arith.cmpi eq, %3, %13 : vector<8x256xi32>
    %cst_4 = arith.constant 0xFF800000 : f32
    %15 = vector.broadcast %cst_4 : f32 to vector<8x256xf32>
    %16 = arith.select %14, %15, %0 : vector<8x256xi1>, vector<8x256xf32>
    %cst_5 = arith.constant dense<0xFF800000> : vector<8xf32>
    %17 = vector.multi_reduction <maximumf>, %16, %cst_5 [1] : vector<8x256xf32> to vector<8xf32>
    %18 = vector.shape_cast %17 : vector<8xf32> to vector<8x1xf32>
    %c0_6 = arith.constant 0 : index
    %c1 = arith.constant 1 : index
    %19 = vector.load %arg2[%c0_6, %c1] : memref<8x5xf32, #tpu.memory_space<vmem>>, vector<8x1xf32>
    tpu.vector_store %arg2[%c0_6, %c1], %18 {strides = array<i32>} : memref<8x5xf32, #tpu.memory_space<vmem>>, vector<8x1xf32>,
    %20 = vector.broadcast %18 : vector<8x1xf32> to vector<8x256xf32>
    %21 = arith.cmpf oeq, %16, %20 : vector<8x256xf32>
    %c-256_i32_7 = arith.constant -256 : i32
    %22 = vector.broadcast %c-256_i32_7 : i32 to vector<8x256xi32>
    %23 = arith.select %21, %3, %22 : vector<8x256xi1>, vector<8x256xi32>
    %cst_8 = arith.constant dense<-2147483648> : vector<8xi32>
    %24 = vector.multi_reduction <maxsi>, %23, %cst_8 [1] : vector<8x256xi32> to vector<8xi32>
    %25 = vector.shape_cast %24 : vector<8xi32> to vector<8x1xi32>
    %26 = vector.broadcast %25 : vector<8x1xi32> to vector<8x256xi32>
    %27 = arith.cmpi eq, %3, %26 : vector<8x256xi32>
    %cst_9 = arith.constant 0xFF800000 : f32
    %28 = vector.broadcast %cst_9 : f32 to vector<8x256xf32>
    %29 = arith.select %27, %28, %16 : vector<8x256xi1>, vector<8x256xf32>
    %cst_10 = arith.constant dense<0xFF800000> : vector<8xf32>
    %30 = vector.multi_reduction <maximumf>, %29, %cst_10 [1] : vector<8x256xf32> to vector<8xf32>
    %31 = vector.shape_cast %30 : vector<8xf32> to vector<8x1xf32>
    %c0_11 = arith.constant 0 : index
    %c2 = arith.constant 2 : index
    %32 = vector.load %arg2[%c0_11, %c2] : memref<8x5xf32, #tpu.memory_space<vmem>>, vector<8x1xf32>
    tpu.vector_store %arg2[%c0_11, %c2], %31 {strides = array<i32>} : memref<8x5xf32, #tpu.memory_space<vmem>>, vector<8x1xf32>,
    %33 = vector.broadcast %31 : vector<8x1xf32> to vector<8x256xf32>
    %34 = arith.cmpf oeq, %29, %33 : vector<8x256xf32>
    %c-256_i32_12 = arith.constant -256 : i32
    %35 = vector.broadcast %c-256_i32_12 : i32 to vector<8x256xi32>
    %36 = arith.select %34, %3, %35 : vector<8x256xi1>, vector<8x256xi32>
    %cst_13 = arith.constant dense<-2147483648> : vector<8xi32>
    %37 = vector.multi_reduction <maxsi>, %36, %cst_13 [1] : vector<8x256xi32> to vector<8xi32>
    %38 = vector.shape_cast %37 : vector<8xi32> to vector<8x1xi32>
    %39 = vector.broadcast %38 : vector<8x1xi32> to vector<8x256xi32>
    %40 = arith.cmpi eq, %3, %39 : vector<8x256xi32>
    %cst_14 = arith.constant 0xFF800000 : f32
    %41 = vector.broadcast %cst_14 : f32 to vector<8x256xf32>
    %42 = arith.select %40, %41, %29 : vector<8x256xi1>, vector<8x256xf32>
    %cst_15 = arith.constant dense<0xFF800000> : vector<8xf32>
    %43 = vector.multi_reduction <maximumf>, %42, %cst_15 [1] : vector<8x256xf32> to vector<8xf32>
    %44 = vector.shape_cast %43 : vector<8xf32> to vector<8x1xf32>
    %c0_16 = arith.constant 0 : index
    %c3 = arith.constant 3 : index
    %45 = vector.load %arg2[%c0_16, %c3] : memref<8x5xf32, #tpu.memory_space<vmem>>, vector<8x1xf32>
    tpu.vector_store %arg2[%c0_16, %c3], %44 {strides = array<i32>} : memref<8x5xf32, #tpu.memory_space<vmem>>, vector<8x1xf32>,
    %46 = vector.broadcast %44 : vector<8x1xf32> to vector<8x256xf32>
    %47 = arith.cmpf oeq, %42, %46 : vector<8x256xf32>
    %c-256_i32_17 = arith.constant -256 : i32
    %48 = vector.broadcast %c-256_i32_17 : i32 to vector<8x256xi32>
    %49 = arith.select %47, %3, %48 : vector<8x256xi1>, vector<8x256xi32>
    %cst_18 = arith.constant dense<-2147483648> : vector<8xi32>
    %50 = vector.multi_reduction <maxsi>, %49, %cst_18 [1] : vector<8x256xi32> to vector<8xi32>
    %51 = vector.shape_cast %50 : vector<8xi32> to vector<8x1xi32>
    %52 = vector.broadcast %51 : vector<8x1xi32> to vector<8x256xi32>
    %53 = arith.cmpi eq, %3, %52 : vector<8x256xi32>
    %cst_19 = arith.constant 0xFF800000 : f32
    %54 = vector.broadcast %cst_19 : f32 to vector<8x256xf32>
    %55 = arith.select %53, %54, %42 : vector<8x256xi1>, vector<8x256xf32>
    %cst_20 = arith.constant dense<0xFF800000> : vector<8xf32>
    %56 = vector.multi_reduction <maximumf>, %55, %cst_20 [1] : vector<8x256xf32> to vector<8xf32>
    %57 = vector.shape_cast %56 : vector<8xf32> to vector<8x1xf32>
    %c0_21 = arith.constant 0 : index
    %c4 = arith.constant 4 : index
    %58 = vector.load %arg2[%c0_21, %c4] : memref<8x5xf32, #tpu.memory_space<vmem>>, vector<8x1xf32>
    tpu.vector_store %arg2[%c0_21, %c4], %57 {strides = array<i32>} : memref<8x5xf32, #tpu.memory_space<vmem>>, vector<8x1xf32>,
    return
  }
  func.func @transform_0(%arg0: i32) -> (i32, i32) {
    %c0_i32 = arith.constant 0 : i32
    %c0_i32_0 = arith.constant 0 : i32
    return %arg0, %c0_i32 : i32, i32
  }
  func.func @transform_1(%arg0: i32) -> (i32, i32) {
    %c0_i32 = arith.constant 0 : i32
    %c0_i32_0 = arith.constant 0 : i32
    return %arg0, %c0_i32 : i32, i32
  }
}

</mosaic_0001>

<llo_original>
// kernel: tpu_custom_call.1
$region0: #{tpu_custom_call.1}
  #allocation0 [shape = 'u32[]', space=smem, size = 0x4, offset = 0x4, fixed_abs, tag = 'smem constant byte address 0x4 - core index']
  #allocation1 [shape = 'u32[144,128]{1,0:T(1,128)}', space=vmem, size = 0x12000, scoped, tag = 'internal scratch']
  %s0 = inlined_call_operand.hbm [shape: f32[8,256], index: 0, kind: input, shape index: {}]
  %s1 = inlined_call_operand.hbm [shape: f32[8,5], index: 1, kind: output, shape index: {}]
  %s2 = sld [smem:[#allocation0]]
  $region18: #{tpu_custom_call.1} parent=0
    _
  %s4 = ssub.s32 1, %s2
  %s5 = scalar_select 0, %s4, %s2
  $region1: #{tpu_custom_call.1} parent=0
    #allocation2 [shape = 'u8[8192]{0}', space=vmem, size = 0x2000, scoped, tag = 'input window, operand 0, single buffered']
    #allocation3 [shape = 's32[1]{0}', space=sflag, size = 0x4, scoped, tag = 'scoped memory for tpu_custom_call.1']
    #allocation4 [shape = 's32[1]{0}', space=sflag, size = 0x4, scoped, tag = 'scoped memory for tpu_custom_call.1']
    #allocation5 [shape = 'u8[4096]{0}', space=vmem, size = 0x1000, scoped, tag = 'output window, operand 0, single buffered']
    %6 = vsyncpa [#allocation3], 0
    %7 = vsyncpa [#allocation4], 0
    // Predicated region
    $region2: #{tpu_custom_call.1} parent=1 // pred_check
      _
    $region3: #{tpu_custom_call.1} parent=1 // pred_check_branch
      %9 = sbr.rel (0) target = $region5
    $region4: #{tpu_custom_call.1} parent=1 // pred_region
      %s11 = ssub.s32 256, 256
      %12 = vsyncadd [#allocation3], %s11
      %s14 = sshll.u32 [#allocation2], 4
      %s15 = int_to_ptr.vmem [resolvable:$true] %s14
      %17 = dma.hbm_to_vmem [thread:$0]  %s0, 256, %s15, [#allocation3]
    $region5: #{tpu_custom_call.1} parent=1 // pred_fallthru
      _
    // Predicated region
    $region6: #{tpu_custom_call.1} parent=1 // pred_check
      _
    $region7: #{tpu_custom_call.1} parent=1 // pred_check_branch
      %19 = sbr.rel (0) target = $region9
    $region8: #{tpu_custom_call.1} parent=1 // pred_region
      %20 = dma.done [#allocation3], 256
    $region9: #{tpu_custom_call.1} parent=1 // pred_fallthru
      _
    %v21 = vld [vmem:[#allocation2] sm:$0xff]
    %v22 = vld [vmem:[#allocation2 + $0x8] sm:$0xff]
    %v23 = vlaneseq
    %v24 = vand.u32 %v23, 127
    %v25 = vadd.s32 %v24, 128
    %v26 = vsub.s32 0, %v24
    %v27 = vsub.s32 0, %v25
    %v28 = vmax.f32 %v21, %v22
    %29 = vmax.xlane.f32.xlu0 %v28
    %v30 = vpop.xlane.xlu0 %29
    %vm31 = vcmask 7168
    %32 = vst.msk [vmem:[#allocation5] sm:$0xff] %vm31, %v30
    %vm33 = vcmp.eq.f32.partialorder %v21, %v30
    %vm34 = vcmp.eq.f32.partialorder %v22, %v30
    %v35 = vsel %vm33, %v26, 4294967040
    %v36 = vsel %vm34, %v27, 4294967040
    %vm37 = vcmp.gt.s32.totalorder %v35, %v36
    %v38 = vsel %vm37, %v35, %v36
    %v39 = vand.u32 %v38, 65535
    %v40 = vshra.s32 %v38, 16
    %v41 = vcvt.s32.f32 %v39
    %v42 = vcvt.s32.f32 %v40
    %43 = vmax.xlane.f32.xlu0 %v42
    %v44 = vpop.xlane.xlu0 %43
    %vm45 = vcmp.eq.f32.partialorder %v42, %v44
    %v46 = vsel %vm45, %v41, -inf
    %47 = vmax.xlane.f32.xlu0 %v46
    %v48 = vpop.xlane.xlu0 %47
    %v49 = vcvt.f32.s32 %v48
    %v50 = vcvt.f32.s32 %v44
    %v51 = vshll.u32 %v50, 16
    %v52 = vadd.s32 %v51, %v49
    %vm53 = vcmp.eq.s32.totalorder %v26, %v52
    %vm54 = vcmp.eq.s32.totalorder %v27, %v52
    %v55 = vsel %vm53, -inf, %v21
    %v56 = vsel %vm54, -inf, %v22
    %v57 = vmax.f32 %v55, %v56
    %58 = vmax.xlane.f32.xlu0 %v57
    %v59 = vpop.xlane.xlu0 %58
    %vm60 = vcmask 15368
    %61 = vst.msk [vmem:[#allocation5] sm:$0xff] %vm60, %v59
    %vm62 = vcmp.eq.f32.partialorder %v55, %v59
    %vm63 = vcmp.eq.f32.partialorder %v56, %v59
    %v64 = vsel %vm62, %v26, 4294967040
    %v65 = vsel %vm63, %v27, 4294967040
    %vm66 = vcmp.gt.s32.totalorder %v64, %v65
    %v67 = vsel %vm66, %v64, %v65
    %v68 = vand.u32 %v67, 65535
    %v69 = vshra.s32 %v67, 16
    %v70 = vcvt.s32.f32 %v68
    %v71 = vcvt.s32.f32 %v69
    %72 = vmax.xlane.f32.xlu0 %v71
    %v73 = vpop.xlane.xlu0 %72
    %vm74 = vcmp.eq.f32.partialorder %v71, %v73
    %v75 = vsel %vm74, %v70, -inf
    %76 = vmax.xlane.f32.xlu0 %v75
    %v77 = vpop.xlane.xlu0 %76
    %v78 = vcvt.f32.s32 %v77
    %v79 = vcvt.f32.s32 %v73
    %v80 = vshll.u32 %v79, 16
    %v81 = vadd.s32 %v80, %v78
    %vm82 = vcmp.eq.s32.totalorder %v26, %v81
    %vm83 = vcmp.eq.s32.totalorder %v27, %v81
    %v84 = vsel %vm82, -inf, %v55
    %v85 = vsel %vm83, -inf, %v56
    %v86 = vmax.f32 %v84, %v85
    %87 = vmax.xlane.f32.xlu0 %v86
    %v88 = vpop.xlane.xlu0 %87
    %vm89 = vcmask 23568
    %90 = vst.msk [vmem:[#allocation5] sm:$0xff] %vm89, %v88
    %vm91 = vcmp.eq.f32.partialorder %v84, %v88
    %vm92 = vcmp.eq.f32.partialorder %v85, %v88
    %v93 = vsel %vm91, %v26, 4294967040
    %v94 = vsel %vm92, %v27, 4294967040
    %vm95 = vcmp.gt.s32.totalorder %v93, %v94
    %v96 = vsel %vm95, %v93, %v94
    %v97 = vand.u32 %v96, 65535
    %v98 = vshra.s32 %v96, 16
    %v99 = vcvt.s32.f32 %v97
    %v100 = vcvt.s32.f32 %v98
    %101 = vmax.xlane.f32.xlu0 %v100
    %v102 = vpop.xlane.xlu0 %101
    %vm103 = vcmp.eq.f32.partialorder %v100, %v102
    %v104 = vsel %vm103, %v99, -inf
    %105 = vmax.xlane.f32.xlu0 %v104
    %v106 = vpop.xlane.xlu0 %105
    %v107 = vcvt.f32.s32 %v106
    %v108 = vcvt.f32.s32 %v102
    %v109 = vshll.u32 %v108, 16
    %v110 = vadd.s32 %v109, %v107
    %vm111 = vcmp.eq.s32.totalorder %v26, %v110
    %vm112 = vcmp.eq.s32.totalorder %v27, %v110
    %v113 = vsel %vm111, -inf, %v84
    %v114 = vsel %vm112, -inf, %v85
    %v115 = vmax.f32 %v113, %v114
    %116 = vmax.xlane.f32.xlu0 %v115
    %v117 = vpop.xlane.xlu0 %116
    %vm118 = vcmask 31768
    %119 = vst.msk [vmem:[#allocation5] sm:$0xff] %vm118, %v117
    %vm120 = vcmp.eq.f32.partialorder %v113, %v117
    %vm121 = vcmp.eq.f32.partialorder %v114, %v117
    %v122 = vsel %vm120, %v26, 4294967040
    %v123 = vsel %vm121, %v27, 4294967040
    %vm124 = vcmp.gt.s32.totalorder %v122, %v123
    %v125 = vsel %vm124, %v122, %v123
    %v126 = vand.u32 %v125, 65535
    %v127 = vshra.s32 %v125, 16
    %v128 = vcvt.s32.f32 %v126
    %v129 = vcvt.s32.f32 %v127
    %130 = vmax.xlane.f32.xlu0 %v129
    %v131 = vpop.xlane.xlu0 %130
    %vm132 = vcmp.eq.f32.partialorder %v129, %v131
    %v133 = vsel %vm132, %v128, -inf
    %134 = vmax.xlane.f32.xlu0 %v133
    %v135 = vpop.xlane.xlu0 %134
    %v136 = vcvt.f32.s32 %v135
    %v137 = vcvt.f32.s32 %v131
    %v138 = vshll.u32 %v137, 16
    %v139 = vadd.s32 %v138, %v136
    %vm140 = vcmp.eq.s32.totalorder %v26, %v139
    %vm141 = vcmp.eq.s32.totalorder %v27, %v139
    %v142 = vsel %vm140, -inf, %v113
    %v143 = vsel %vm141, -inf, %v114
    %v144 = vmax.f32 %v142, %v143
    %145 = vmax.xlane.f32.xlu0 %v144
    %v146 = vpop.xlane.xlu0 %145
    %vm147 = vcmask 39968
    %148 = vst.msk [vmem:[#allocation5] sm:$0xff] %vm147, %v146
    // Predicated region
    $region10: #{tpu_custom_call.1} parent=1 // pred_check
      _
    $region11: #{tpu_custom_call.1} parent=1 // pred_check_branch
      %150 = sbr.rel (0) target = $region13
    $region12: #{tpu_custom_call.1} parent=1 // pred_region
      %s152 = ssub.s32 128, 128
      %153 = vsyncadd [#allocation4], %s152
      %s155 = sshll.u32 [#allocation5], 4
      %s156 = int_to_ptr.vmem [resolvable:$true] %s155
      %158 = dma.vmem_to_hbm [thread:$0]  %s156, 128, %s1, [#allocation4]
    $region13: #{tpu_custom_call.1} parent=1 // pred_fallthru
      _
    // Predicated region
    $region14: #{tpu_custom_call.1} parent=1 // pred_check
      _
    $region15: #{tpu_custom_call.1} parent=1 // pred_check_branch
      %160 = sbr.rel (0) target = $region17
    $region16: #{tpu_custom_call.1} parent=1 // pred_region
      %161 = dma.done [#allocation4], 128
    $region17: #{tpu_custom_call.1} parent=1 // pred_fallthru
      _
    %162 = vsyncpa [#allocation3], 1
    %163 = vsyncpa [#allocation4], 1

</llo_original>
